<compile_context>
chip_gen: v5e
topology: v5e:2x2
jax: 0.10.0
libtpu: 0.0.40
codegen_flags: <defaults>
</compile_context>

<pallas_src>
import jax
import jax.numpy as jnp
import numpy as np
from jax.experimental import pallas as pl
from jax.experimental.pallas import tpu as pltpu


def _round_up(x, m):
    return (x + m - 1) // m * m


def _vision_embed_kernel(patches_ref, w_ref, b_ref, mask_ref, mtok_ref, out_ref):
    # patches_ref: (tm, Kp) bf16    w_ref:    (Kp, te) bf16
    # b_ref:       (1, te)  f32     mask_ref: (tm, 1)  f32
    # mtok_ref:    (1, te)  f32     out_ref:  (tm, te) f32
    proj = jnp.dot(patches_ref[...], w_ref[...],
                   preferred_element_type=jnp.float32)     # MXU, f32 accumulate
    proj = proj + b_ref[...]
    w = mask_ref[...]                                      # (tm, 1) broadcast over lanes
    out_ref[...] = (proj * (1.0 - w) + mtok_ref[...] * w).astype(out_ref.dtype)


def vision_embedder_forward(x, conv_w, conv_b, mask_token, cls_token,
                            masked_position, patch_size,
                            tm=256, te_max=512, compute_dtype=jnp.bfloat16):
    """Pallas implementation of VisionEmbedder.forward.

    x:               (B, C, H, W)   NCHW image (PyTorch layout)
    conv_w:          (E, C, ph, pw) Conv2d weight (OIHW)
    conv_b:          (E,)           Conv2d bias
    mask_token:      (1, 1, E) or None
    cls_token:       (1, 1, E) or None
    masked_position: (B, num_patches) or None
    returns:         (B, num_patches [+1 if cls], E) float32
    """
    B, C, H, W = x.shape
    ph, pw = patch_size
    Hp, Wp = H // ph, W // pw
    N = Hp * Wp
    E = conv_w.shape[0]
    K = C * ph * pw
    M = B * N

    # ---- padded / tiled geometry -------------------------------------------
    Kp = _round_up(K, 128)                     # lane-dense contraction dim
    Ep = _round_up(E, 128)                     # lane-dense output dim
    te = min(Ep, _round_up(te_max, 128))       # E tile (keeps weight tile small)
    tm_eff = min(tm, _round_up(M, 16))         # don't tile bigger than the data
    tm_eff = max(16, (tm_eff // 16) * 16)      # bf16 sublane packing -> mult of 16
    Mp = _round_up(M, tm_eff)                  # tail handled by zero padding

    # ---- glue: patch matrix in bf16, feature order (c, kh, kw) = OIHW -------
    x_lp = x.astype(compute_dtype)
    patches = x_lp.reshape(B, C, Hp, ph, Wp, pw).transpose(0, 2, 4, 1, 3, 5)
    patches = patches.reshape(M, K)
    patches = jnp.pad(patches, ((0, Mp - M), (0, Kp - K)))

    w_mat = conv_w.reshape(E, K).T.astype(compute_dtype)               # (K, E)
    w_mat = jnp.pad(w_mat, ((0, Kp - K), (0, Ep - E)))
    bias = jnp.pad(conv_b.astype(jnp.float32).reshape(1, E), ((0, 0), (0, Ep - E)))

    if mask_token is None or masked_position is None:
        mtok = jnp.zeros((1, Ep), jnp.float32)
        mask = jnp.zeros((Mp, 1), jnp.float32)          # w == 0 -> pass-through
    else:
        mtok = jnp.pad(mask_token.reshape(1, E).astype(jnp.float32),
                       ((0, 0), (0, Ep - E)))
        mask = masked_position.reshape(M, 1).astype(jnp.float32)
        mask = jnp.pad(mask, ((0, Mp - M), (0, 0)))

    grid = (Mp // tm_eff, Ep // te)

    # ---- VMEM budget / cost hints -------------------------------------------
    bf, f32 = 2, 4
    vmem_need = (2 * tm_eff * Kp * bf          # double-buffered patch tiles
                 + 2 * Kp * te * bf            # double-buffered weight tiles
                 + 2 * tm_eff * te * f32       # double-buffered output tiles
                 + 4 * te * f32 + 4 * tm_eff * f32)
    vmem_limit = int(min(max(2 * vmem_need, 32 * 1024 * 1024), 64 * 1024 * 1024))
    cost = pl.CostEstimate(
        flops=2 * Mp * Kp * Ep,
        transcendentals=0,
        bytes_accessed=(patches.size * bf + w_mat.size * bf
                        + bias.size * f32 + mask.size * f32 + mtok.size * f32
                        + Mp * Ep * f32))

    out = pl.pallas_call(
        _vision_embed_kernel,
        out_shape=jax.ShapeDtypeStruct((Mp, Ep), jnp.float32),
        grid_spec=pltpu.PrefetchScalarGridSpec(
            num_scalar_prefetch=0,
            grid=grid,
            in_specs=[
                pl.BlockSpec((tm_eff, Kp), lambda i, j: (i, 0)),  # patch tile (resident over j)
                pl.BlockSpec((Kp, te), lambda i, j: (0, j)),      # weight tile
                pl.BlockSpec((1, te), lambda i, j: (0, j)),       # bias
                pl.BlockSpec((tm_eff, 1), lambda i, j: (i, 0)),   # masked_position
                pl.BlockSpec((1, te), lambda i, j: (0, j)),       # mask token
            ],
            out_specs=pl.BlockSpec((tm_eff, te), lambda i, j: (i, j)),
        ),
        compiler_params=pltpu.CompilerParams(
            dimension_semantics=("parallel", "parallel"),
            vmem_limit_bytes=vmem_limit),
        cost_estimate=cost,
    )(patches, w_mat, bias, mask, mtok)

    out = out[:M, :E].reshape(B, N, E)

    if cls_token is not None:
        cls = jnp.broadcast_to(cls_token.reshape(1, 1, E), (B, 1, E)).astype(out.dtype)
        out = jnp.concatenate([cls, out], axis=1)
    return out


def _reference_forward(x, conv_w, conv_b, mask_token, cls_token, masked_position):
    """Pure-JAX (f32) reference mirroring the PyTorch forward exactly."""
    B = x.shape[0]
    E = conv_w.shape[0]
    y = jax.lax.conv_general_dilated(
        x, conv_w, window_strides=conv_w.shape[2:], padding="VALID",
        dimension_numbers=("NCHW", "OIHW", "NCHW"))          # (B, E, Hp, Wp)
    y = y + conv_b.reshape(1, E, 1, 1)
    y = y.reshape(B, E, -1).transpose(0, 2, 1)               # flatten(2).transpose(1,2)
    if masked_position is not None and mask_token is not None:
        w = masked_position[..., None].astype(y.dtype)
        y = y * (1 - w) + mask_token.reshape(1, 1, E) * w
    if cls_token is not None:
        cls = jnp.broadcast_to(cls_token.reshape(1, 1, E), (B, 1, E))
        y = jnp.concatenate([cls, y], axis=1)
    return y


if __name__ == "__main__":
    # Small shapes consistent with the module: image 16x16, patch 4, C=3, E=32.
    B, C, H, W = 2, 3, 16, 16
    PH, PW = 4, 4
    E = 32
    N = (H // PH) * (W // PW)

    key = jax.random.PRNGKey(0)
    kx, kw, kb, km, kc, kmask = jax.random.split(key, 6)

    x = jax.random.normal(kx, (B, C, H, W), jnp.float32)
    conv_w = jax.random.normal(kw, (E, C, PH, PW), jnp.float32) * 0.05
    conv_b = jax.random.normal(kb, (E,), jnp.float32) * 0.05
    # PyTorch inits these to zeros; use small random values so the mask/cls
    # paths are actually exercised by the numeric check.
    mask_token = jax.random.normal(km, (1, 1, E), jnp.float32) * 0.02
    cls_token = jax.random.normal(kc, (1, 1, E), jnp.float32) * 0.02
    masked_position = (jax.random.uniform(kmask, (B, N)) > 0.5).astype(jnp.int32)

    # Full path: mask token + cls token.
    out = vision_embedder_forward(
        x, conv_w, conv_b, mask_token, cls_token, masked_position,
        patch_size=(PH, PW))
    out = jax.block_until_ready(out)
    ref = _reference_forward(x, conv_w, conv_b, mask_token, cls_token, masked_position)
    assert out.shape == (B, N + 1, E), out.shape
    # bf16 operand streams with f32 accumulation -> loose-but-honest tolerance
    np.testing.assert_allclose(np.asarray(out), np.asarray(ref), rtol=2e-2, atol=2e-2)

    # Plain path: no mask token, no cls token.
    out2 = vision_embedder_forward(
        x, conv_w, conv_b, None, None, None, patch_size=(PH, PW))
    out2 = jax.block_until_ready(out2)
    ref2 = _reference_forward(x, conv_w, conv_b, None, None, None)
    assert out2.shape == (B, N, E), out2.shape
    np.testing.assert_allclose(np.asarray(out2), np.asarray(ref2), rtol=2e-2, atol=2e-2)

    print("KERNEL_OK")
</pallas_src>

<mosaic_0001>
module attributes {stable_mosaic.version = 11 : i64} {
  func.func @_vision_embed_kernel(%arg0: i32, %arg1: i32, %arg2: memref<32x128xbf16, #tpu.memory_space<vmem>>, %arg3: memref<128x128xbf16, #tpu.memory_space<vmem>>, %arg4: memref<1x128xf32, #tpu.memory_space<vmem>>, %arg5: memref<32x1xf32, #tpu.memory_space<vmem>>, %arg6: memref<1x128xf32, #tpu.memory_space<vmem>>, %arg7: memref<32x128xf32, #tpu.memory_space<vmem>>) attributes {dimension_semantics = [#tpu.dimension_semantics<parallel>, #tpu.dimension_semantics<parallel>], iteration_bounds = array<i64: 1, 1>, scalar_prefetch = 0 : i64, scratch_operands = 0 : i64, tpu.core_type = #tpu.core_type<tc>, window_params = [{transform_indices = @transform_0, window_bounds = array<i64: 32, 128>}, {transform_indices = @transform_1, window_bounds = array<i64: 128, 128>}, {transform_indices = @transform_2, window_bounds = array<i64: 1, 128>}, {transform_indices = @transform_3, window_bounds = array<i64: 32, 1>}, {transform_indices = @transform_4, window_bounds = array<i64: 1, 128>}, {transform_indices = @transform_5, window_bounds = array<i64: 32, 128>}]} {
    %c0 = arith.constant 0 : index
    %c0_0 = arith.constant 0 : index
    %0 = vector.load %arg2[%c0, %c0_0] : memref<32x128xbf16, #tpu.memory_space<vmem>>, vector<32x128xbf16>
    %c0_1 = arith.constant 0 : index
    %c0_2 = arith.constant 0 : index
    %1 = vector.load %arg3[%c0_1, %c0_2] : memref<128x128xbf16, #tpu.memory_space<vmem>>, vector<128x128xbf16>
    %cst = arith.constant dense<0.000000e+00> : vector<32x128xf32>
    %2 = tpu.matmul %0, %1, %cst {dimension_numbers = #tpu.dot_dimension_numbers<[1], [0], [0], [1], [0, 0, 1, 1], [], []>} : vector<32x128xbf16>, vector<128x128xbf16>, vector<32x128xf32> -> vector<32x128xf32>
    %c0_3 = arith.constant 0 : index
    %c0_4 = arith.constant 0 : index
    %3 = vector.load %arg4[%c0_3, %c0_4] : memref<1x128xf32, #tpu.memory_space<vmem>>, vector<1x128xf32>
    %4 = vector.broadcast %3 : vector<1x128xf32> to vector<32x128xf32>
    %5 = arith.addf %2, %4 : vector<32x128xf32>
    %c0_5 = arith.constant 0 : index
    %c0_6 = arith.constant 0 : index
    %6 = vector.load %arg5[%c0_5, %c0_6] : memref<32x1xf32, #tpu.memory_space<vmem>>, vector<32x1xf32>
    %cst_7 = arith.constant 1.000000e+00 : f32
    %7 = vector.broadcast %cst_7 : f32 to vector<32x1xf32>
    %8 = arith.subf %7, %6 : vector<32x1xf32>
    %9 = vector.broadcast %8 : vector<32x1xf32> to vector<32x128xf32>
    %10 = arith.mulf %5, %9 : vector<32x128xf32>
    %c0_8 = arith.constant 0 : index
    %c0_9 = arith.constant 0 : index
    %11 = vector.load %arg6[%c0_8, %c0_9] : memref<1x128xf32, #tpu.memory_space<vmem>>, vector<1x128xf32>
    %12 = vector.broadcast %11 : vector<1x128xf32> to vector<32x128xf32>
    %13 = vector.broadcast %6 : vector<32x1xf32> to vector<32x128xf32>
    %14 = arith.mulf %12, %13 : vector<32x128xf32>
    %15 = arith.addf %10, %14 : vector<32x128xf32>
    %c0_10 = arith.constant 0 : index
    %c0_11 = arith.constant 0 : index
    %16 = vector.load %arg7[%c0_10, %c0_11] : memref<32x128xf32, #tpu.memory_space<vmem>>, vector<32x128xf32>
    tpu.vector_store %arg7[%c0_10, %c0_11], %15 {strides = array<i32>} : memref<32x128xf32, #tpu.memory_space<vmem>>, vector<32x128xf32>,
    return
  }
  func.func @transform_0(%arg0: i32, %arg1: i32) -> (i32, i32) {
    %c0_i32 = arith.constant 0 : i32
    %c0_i32_0 = arith.constant 0 : i32
    return %arg0, %c0_i32 : i32, i32
  }
  func.func @transform_1(%arg0: i32, %arg1: i32) -> (i32, i32) {
    %c0_i32 = arith.constant 0 : i32
    %c0_i32_0 = arith.constant 0 : i32
    return %c0_i32, %arg1 : i32, i32
  }
  func.func @transform_2(%arg0: i32, %arg1: i32) -> (i32, i32) {
    %c0_i32 = arith.constant 0 : i32
    %c0_i32_0 = arith.constant 0 : i32
    return %c0_i32, %arg1 : i32, i32
  }
  func.func @transform_3(%arg0: i32, %arg1: i32) -> (i32, i32) {
    %c0_i32 = arith.constant 0 : i32
    %c0_i32_0 = arith.constant 0 : i32
    return %arg0, %c0_i32 : i32, i32
  }
  func.func @transform_4(%arg0: i32, %arg1: i32) -> (i32, i32) {
    %c0_i32 = arith.constant 0 : i32
    %c0_i32_0 = arith.constant 0 : i32
    return %c0_i32, %arg1 : i32, i32
  }
  func.func @transform_5(%arg0: i32, %arg1: i32) -> (i32, i32) {
    %c0_i32 = arith.constant 0 : i32
    return %arg0, %arg1 : i32, i32
  }
}

</mosaic_0001>

<llo_original>
// kernel: tpu_custom_call.1
$region0: #{tpu_custom_call.1}
  #allocation0 [shape = 'u32[]', space=smem, size = 0x4, offset = 0x4, fixed_abs, tag = 'smem constant byte address 0x4 - core index']
  #allocation1 [shape = 'u32[72,128]{1,0:T(1,128)}', space=vmem, size = 0x9000, scoped, tag = 'internal scratch']
  %s0 = inlined_call_operand.vmem [shape: bf16[32,128], index: 0, kind: input, shape index: {}]
  %s1 = inlined_call_operand.hbm [shape: bf16[128,128], index: 1, kind: input, shape index: {}]
  %s2 = inlined_call_operand.vmem [shape: f32[1,128], index: 2, kind: input, shape index: {}]
  %s3 = inlined_call_operand.vmem [shape: f32[32,1], index: 3, kind: input, shape index: {}]
  %s4 = inlined_call_operand.vmem [shape: f32[1,128], index: 4, kind: input, shape index: {}]
  %s5 = inlined_call_operand.hbm [shape: f32[32,128], index: 5, kind: output, shape index: {}]
  %s6 = sld [smem:[#allocation0]]
  $region34: #{tpu_custom_call.1} parent=0
    _
  %s8 = ssub.s32 1, %s6
  %s9 = scalar_select 0, %s8, %s6
  $region1: #{tpu_custom_call.1} parent=0
    #allocation2 [shape = 'u8[32768]{0}', space=vmem, size = 0x8000, scoped, tag = 'input window, operand 1, single buffered']
    #allocation3 [shape = 's32[1]{0}', space=sflag, size = 0x4, scoped, tag = 'scoped memory for tpu_custom_call.1']
    #allocation4 [shape = 's32[1]{0}', space=sflag, size = 0x4, scoped, tag = 'scoped memory for tpu_custom_call.1']
    #allocation5 [shape = 'u8[16384]{0}', space=vmem, size = 0x4000, scoped, tag = 'output window, operand 0, single buffered']
    %10 = vsyncpa [#allocation3], 0
    %11 = vsyncpa [#allocation4], 0
    // Predicated region
    $region2: #{tpu_custom_call.1} parent=1 // pred_check
      _
    $region3: #{tpu_custom_call.1} parent=1 // pred_check_branch
      %13 = sbr.rel (0) target = $region5
    $region4: #{tpu_custom_call.1} parent=1 // pred_region
      _
    $region5: #{tpu_custom_call.1} parent=1 // pred_fallthru
      _
    // Predicated region
    $region6: #{tpu_custom_call.1} parent=1 // pred_check
      _
    $region7: #{tpu_custom_call.1} parent=1 // pred_check_branch
      %15 = sbr.rel (0) target = $region9
    $region8: #{tpu_custom_call.1} parent=1 // pred_region
      %17 = vsyncadd [#allocation3], 0
      %s18 = sshll.u32 %s1, 4
      %s19 = int_to_ptr.hbm [resolvable:$true] %s18
      %s20 = sshll.u32 [#allocation2], 4
      %s21 = int_to_ptr.vmem [resolvable:$true] %s20
      %26 = dma.hbm_to_vmem [thread:$0]  %s19, 1024, %s21, [#allocation3], 64, 64, 4
    $region9: #{tpu_custom_call.1} parent=1 // pred_fallthru
      _
    // Predicated region
    $region10: #{tpu_custom_call.1} parent=1 // pred_check
      _
    $region11: #{tpu_custom_call.1} parent=1 // pred_check_branch
      %28 = sbr.rel (0) target = $region13
    $region12: #{tpu_custom_call.1} parent=1 // pred_region
      _
    $region13: #{tpu_custom_call.1} parent=1 // pred_fallthru
      _
    // Predicated region
    $region14: #{tpu_custom_call.1} parent=1 // pred_check
      _
    $region15: #{tpu_custom_call.1} parent=1 // pred_check_branch
      %30 = sbr.rel (0) target = $region17
    $region16: #{tpu_custom_call.1} parent=1 // pred_region
      _
    $region17: #{tpu_custom_call.1} parent=1 // pred_fallthru
      _
    // Predicated region
    $region18: #{tpu_custom_call.1} parent=1 // pred_check
      _
    $region19: #{tpu_custom_call.1} parent=1 // pred_check_branch
      %32 = sbr.rel (0) target = $region21
    $region20: #{tpu_custom_call.1} parent=1 // pred_region
      _
    $region21: #{tpu_custom_call.1} parent=1 // pred_fallthru
      _
    // Predicated region
    $region22: #{tpu_custom_call.1} parent=1 // pred_check
      _
    $region23: #{tpu_custom_call.1} parent=1 // pred_check_branch
      %34 = sbr.rel (0) target = $region25
    $region24: #{tpu_custom_call.1} parent=1 // pred_region
      %36 = dma.done [#allocation3], 1024
    $region25: #{tpu_custom_call.1} parent=1 // pred_fallthru
      _
    %v37 = vld [vmem:[%s0] sm:$0xf]
    %v38 = vld [vmem:[%s0 + $0x4] sm:$0xf]
    %v39 = vld [vmem:[%s0 + $0x8] sm:$0xf]
    %v40 = vld [vmem:[%s0 + $0xc] sm:$0xf]
    %v41 = vld [vmem:[#allocation2] sm:$0xf]
    %v42 = vld [vmem:[#allocation2 + $0x4] sm:$0xf]
    %v43 = vld [vmem:[#allocation2 + $0x8] sm:$0xf]
    %v44 = vld [vmem:[#allocation2 + $0xc] sm:$0xf]
    %v45 = vld [vmem:[#allocation2 + $0x10] sm:$0xf]
    %v46 = vld [vmem:[#allocation2 + $0x14] sm:$0xf]
    %v47 = vld [vmem:[#allocation2 + $0x18] sm:$0xf]
    %v48 = vld [vmem:[#allocation2 + $0x1c] sm:$0xf]
    %v49 = vld [vmem:[#allocation2 + $0x20] sm:$0xf]
    %v50 = vld [vmem:[#allocation2 + $0x24] sm:$0xf]
    %v51 = vld [vmem:[#allocation2 + $0x28] sm:$0xf]
    %v52 = vld [vmem:[#allocation2 + $0x2c] sm:$0xf]
    %v53 = vld [vmem:[#allocation2 + $0x30] sm:$0xf]
    %v54 = vld [vmem:[#allocation2 + $0x34] sm:$0xf]
    %v55 = vld [vmem:[#allocation2 + $0x38] sm:$0xf]
    %v56 = vld [vmem:[#allocation2 + $0x3c] sm:$0xf]
    %v57 = vld [vmem:[%s2] sm:$0x1]
    %v59 = vperm.slane %v57, 0
    %v65 = vunpack.c.l.b16 %v37
    %v66 = vunpack.c.l.b16 %v38
    %v67 = vunpack.c.l.b16 %v39
    %v68 = vunpack.c.l.b16 %v40
    %v69 = vpack.c.b16 %v66, %v65
    %v70 = vpack.c.b16 %v68, %v67
    %v89 = vunpack.c.l.b16 %v41
    %v90 = vunpack.c.l.b16 %v42
    %v91 = vunpack.c.l.b16 %v43
    %v92 = vunpack.c.l.b16 %v44
    %v93 = vunpack.c.l.b16 %v45
    %v94 = vunpack.c.l.b16 %v46
    %v95 = vunpack.c.l.b16 %v47
    %v96 = vunpack.c.l.b16 %v48
    %v97 = vunpack.c.l.b16 %v49
    %v98 = vunpack.c.l.b16 %v50
    %v99 = vunpack.c.l.b16 %v51
    %v100 = vunpack.c.l.b16 %v52
    %v101 = vunpack.c.l.b16 %v53
    %v102 = vunpack.c.l.b16 %v54
    %v103 = vunpack.c.l.b16 %v55
    %v104 = vunpack.c.l.b16 %v56
    %v105 = vpack.c.b16 %v90, %v89
    %v106 = vpack.c.b16 %v92, %v91
    %v107 = vpack.c.b16 %v94, %v93
    %v108 = vpack.c.b16 %v96, %v95
    %v109 = vpack.c.b16 %v98, %v97
    %v110 = vpack.c.b16 %v100, %v99
    %v111 = vpack.c.b16 %v102, %v101
    %v112 = vpack.c.b16 %v104, %v103
    %121 = vmatpush.bf16.msra.mxu0 %v112
    %122 = vmatpush.bf16.msra.mxu0 %v111
    %123 = vmatpush.bf16.msra.mxu0 %v110
    %124 = vmatpush.bf16.msra.mxu0 %v109
    %125 = vmatpush.bf16.msra.mxu0 %v108
    %126 = vmatpush.bf16.msra.mxu0 %v107
    %127 = vmatpush.bf16.msra.mxu0 %v106
    %128 = vmatpush.bf16.msra.mxu0 %v105
    %129 = vmatmul.bf16.gmra.mxu0 %v69
    %v130 = vpop.f32.mrf.mxu0
    %v131 = vadd.f32 %v59, %v130
    %v132 = vpop.f32.mrf.mxu0
    %v133 = vadd.f32 %v59, %v132
    %134 = vmatmul.bf16.gmra.mxu0 %v70
    %v135 = vpop.f32.mrf.mxu0
    %v136 = vadd.f32 %v59, %v135
    %v137 = vpop.f32.mrf.mxu0
    %v138 = vadd.f32 %v59, %v137
    %139 = vdwg.mxu0
    %v140 = vld [vmem:[%s3] sm:$0xff]
    %v141 = vld [vmem:[%s3 + $0x8] sm:$0xff]
    %v142 = vld [vmem:[%s3 + $0x10] sm:$0xff]
    %v143 = vld [vmem:[%s3 + $0x18] sm:$0xff]
    %v144 = vsub.f32 1.0, %v140
    %v145 = vsub.f32 1.0, %v141
    %v146 = vsub.f32 1.0, %v142
    %v147 = vsub.f32 1.0, %v143
    %149 = vset.pattern.permute.xlu0 0
    %150 = vperm.xlu0 %149, %v144
    %v151 = vpop.permute.xlu0 %150
    %154 = vset.pattern.permute.xlu0 0
    %155 = vperm.xlu0 %154, %v145
    %v156 = vpop.permute.xlu0 %155
    %159 = vset.pattern.permute.xlu0 0
    %160 = vperm.xlu0 %159, %v146
    %v161 = vpop.permute.xlu0 %160
    %164 = vset.pattern.permute.xlu0 0
    %165 = vperm.xlu0 %164, %v147
    %v166 = vpop.permute.xlu0 %165
    %v168 = vmul.f32 %v131, %v151
    %v169 = vmul.f32 %v133, %v156
    %v170 = vmul.f32 %v136, %v161
    %v171 = vmul.f32 %v138, %v166
    %v172 = vld [vmem:[%s4] sm:$0x1]
    %v174 = vperm.slane %v172, 0
    %177 = vset.pattern.permute.xlu0 0
    %178 = vperm.xlu0 %177, %v140
    %v179 = vpop.permute.xlu0 %178
    %182 = vset.pattern.permute.xlu0 0
    %183 = vperm.xlu0 %182, %v141
    %v184 = vpop.permute.xlu0 %183
    %187 = vset.pattern.permute.xlu0 0
    %188 = vperm.xlu0 %187, %v142
    %v189 = vpop.permute.xlu0 %188
    %192 = vset.pattern.permute.xlu0 0
    %193 = vperm.xlu0 %192, %v143
    %v194 = vpop.permute.xlu0 %193
    %v196 = vmul.f32 %v174, %v179
    %v197 = vmul.f32 %v174, %v184
    %v198 = vmul.f32 %v174, %v189
    %v199 = vmul.f32 %v174, %v194
    %v200 = vadd.f32 %v168, %v196
    %v201 = vadd.f32 %v169, %v197
    %v202 = vadd.f32 %v170, %v198
    %v203 = vadd.f32 %v171, %v199
    %204 = vst [vmem:[#allocation5] sm:$0xff] %v200
    %205 = vst [vmem:[#allocation5 + $0x8] sm:$0xff] %v201
    %206 = vst [vmem:[#allocation5 + $0x10] sm:$0xff] %v202
    %207 = vst [vmem:[#allocation5 + $0x18] sm:$0xff] %v203
    // Predicated region
    $region26: #{tpu_custom_call.1} parent=1 // pred_check
      _
    $region27: #{tpu_custom_call.1} parent=1 // pred_check_branch
      %209 = sbr.rel (0) target = $region29
    $region28: #{tpu_custom_call.1} parent=1 // pred_region
      %211 = vsyncadd [#allocation4], 0
      %s212 = sshll.u32 [#allocation5], 4
      %s213 = int_to_ptr.vmem [resolvable:$true] %s212
      %s214 = sshll.u32 %s5, 4
      %s215 = int_to_ptr.hbm [resolvable:$true] %s214
      %220 = dma.vmem_to_hbm [thread:$0]  %s213, 512, %s215, [#allocation4], 128, 128, 8
    $region29: #{tpu_custom_call.1} parent=1 // pred_fallthru
      _
    // Predicated region
    $region30: #{tpu_custom_call.1} parent=1 // pred_check
      _
    $region31: #{tpu_custom_call.1} parent=1 // pred_check_branch
      %222 = sbr.rel (0) target = $region33
    $region32: #{tpu_custom_call.1} parent=1 // pred_region
      %224 = dma.done [#allocation4], 512
    $region33: #{tpu_custom_call.1} parent=1 // pred_fallthru
      _
    %225 = vsyncpa [#allocation3], 1
    %226 = vsyncpa [#allocation4], 1

</llo_original>
